<compile_context>
chip_gen: v7x
topology: tpu7x:2x2x1
jax: 0.10.0
libtpu: 0.0.40
codegen_flags: <defaults>
</compile_context>

<pallas_src>
import functools

import jax
import jax.numpy as jnp
from jax.experimental import pallas as pl
from jax.experimental.pallas import tpu as pltpu

R_LOSS_FACTOR = 500.0
_LANES = 128
_TARGET_TILE_ROWS = 2048  # 2048 x 128 x 4B = 1 MiB per input block


def _cdiv(a, b):
    return -(-a // b)


def _round_up(x, m):
    return _cdiv(x, m) * m


# ---------------------------------------------------------------------------
# Fused SSE + KL kernel.
# Grid: (n_cores [parallel], tiles_per_core [arbitrary/reduction]).
# acc_ref is a full-block-shaped VMEM accumulator (pure VPU adds in the steady
# state); the single cross-lane reduce + KL + scaling happen in the epilogue.
# Each core writes its own (1,1) partial; KL is added exactly once (c == 0).
# ---------------------------------------------------------------------------
def _vae_loss_kernel(x_ref, t_ref, zm_ref, zlv_ref, o_ref, acc_ref, *, mse_scale):
    c = pl.program_id(0)  # parallel (core-split) axis
    i = pl.program_id(1)  # reduction axis

    @pl.when(i == 0)
    def _():
        acc_ref[...] = jnp.zeros_like(acc_ref)

    d = t_ref[...].astype(jnp.float32) - x_ref[...].astype(jnp.float32)
    acc_ref[...] += d * d  # full vreg-width accumulation, no per-step reduce

    @pl.when(i == pl.num_programs(1) - 1)
    def _():
        partial = jnp.sum(acc_ref[...]) * mse_scale  # single epilogue reduce
        zm = zm_ref[...].astype(jnp.float32)
        zlv = zlv_ref[...].astype(jnp.float32)
        kl = -0.5 * jnp.sum(1.0 + zlv - zm * zm - jnp.exp(zlv))
        total = partial + jnp.where(c == 0, kl, jnp.float32(0.0))
        o_ref[...] = jnp.full_like(o_ref, total)


def vae_loss(inputs, targets, z_mean, z_log_var):
    """Pallas implementation of VAELoss.forward.

    inputs / targets   : (N, C, H, W) float  (NCHW, like PyTorch)
    z_mean / z_log_var : (N, Z) float
    returns scalar float32 loss.
    """
    n_elem = inputs.size
    x = inputs.reshape(-1).astype(jnp.float32)
    t = targets.reshape(-1).astype(jnp.float32)

    # ---- tiling: biggest block up to _TARGET_TILE_ROWS rows; 2-way core split
    # ---- when there is at least 2 tiles worth of work.
    rows = _cdiv(n_elem, _LANES)
    tile_rows = min(_TARGET_TILE_ROWS, _round_up(rows, 8))
    n_tiles = _cdiv(rows, tile_rows)
    n_cores = 2 if n_tiles >= 2 else 1
    tiles_per_core = _cdiv(n_tiles, n_cores)
    padded_rows = n_cores * tiles_per_core * tile_rows
    padded_elems = padded_rows * _LANES

    # Zero-pad BOTH tensors identically -> padded diff is exactly 0 (safe for SSE).
    pad = padded_elems - n_elem
    if pad:
        x = jnp.pad(x, (0, pad))
        t = jnp.pad(t, (0, pad))
    x = x.reshape(padded_rows, _LANES)
    t = t.reshape(padded_rows, _LANES)

    zm = z_mean if z_mean.ndim == 2 else z_mean.reshape(z_mean.shape[0], -1)
    zlv = z_log_var if z_log_var.ndim == 2 else z_log_var.reshape(z_log_var.shape[0], -1)

    mse_scale = float(R_LOSS_FACTOR) / float(n_elem)
    kernel = functools.partial(_vae_loss_kernel, mse_scale=mse_scale)

    img_spec = pl.BlockSpec(
        (tile_rows, _LANES), lambda c, i: (c * tiles_per_core + i, 0)
    )
    partials = pl.pallas_call(
        kernel,
        out_shape=jax.ShapeDtypeStruct((n_cores, 1), jnp.float32),
        grid_spec=pltpu.PrefetchScalarGridSpec(
            num_scalar_prefetch=0,
            grid=(n_cores, tiles_per_core),
            in_specs=[
                img_spec,
                img_spec,
                pl.BlockSpec(zm.shape, lambda c, i: (0, 0)),   # latents: full block,
                pl.BlockSpec(zlv.shape, lambda c, i: (0, 0)),  # constant index -> resident
            ],
            out_specs=pl.BlockSpec((1, 1), lambda c, i: (c, 0)),
            scratch_shapes=[pltpu.VMEM((tile_rows, _LANES), jnp.float32)],
        ),
        compiler_params=pltpu.CompilerParams(
            dimension_semantics=("parallel", "arbitrary"),
        ),
    )(x, t, zm, zlv)

    return jnp.sum(partials)


def vae_loss_ref(inputs, targets, z_mean, z_log_var):
    kl = -0.5 * jnp.sum(1.0 + z_log_var - z_mean**2 - jnp.exp(z_log_var))
    mse = R_LOSS_FACTOR * jnp.mean((targets - inputs) ** 2)
    return mse + kl


if __name__ == "__main__":
    key = jax.random.PRNGKey(0)
    k1, k2, k3, k4 = jax.random.split(key, 4)

    N, C, H, W = 2, 4, 16, 16   # image reconstruction shapes (NCHW)
    Z = 32                      # latent dim

    inputs = jax.random.normal(k1, (N, C, H, W), dtype=jnp.float32)
    targets = jax.random.normal(k2, (N, C, H, W), dtype=jnp.float32)
    z_mean = jax.random.normal(k3, (N, Z), dtype=jnp.float32) * 0.5
    z_log_var = jax.random.normal(k4, (N, Z), dtype=jnp.float32) * 0.1

    loss = jax.jit(vae_loss)(inputs, targets, z_mean, z_log_var)
    jax.block_until_ready(loss)

    ref = vae_loss_ref(inputs, targets, z_mean, z_log_var)
    assert jnp.allclose(loss, ref, rtol=1e-5, atol=1e-5), (loss, ref)

    # Also exercise a shape that forces padding + multi-tile + 2-way core split.
    N2, C2, H2, W2 = 3, 3, 28, 28
    i2 = jax.random.normal(k1, (N2, C2, H2, W2), dtype=jnp.float32)
    t2 = jax.random.normal(k2, (N2, C2, H2, W2), dtype=jnp.float32)
    loss2 = jax.jit(vae_loss)(i2, t2, z_mean, z_log_var)
    jax.block_until_ready(loss2)
    ref2 = vae_loss_ref(i2, t2, z_mean, z_log_var)
    assert jnp.allclose(loss2, ref2, rtol=1e-5, atol=1e-5), (loss2, ref2)

    print("KERNEL_OK")
</pallas_src>

<mosaic_0001>
module attributes {stable_mosaic.version = 11 : i64} {
  func.func @_vae_loss_kernel(%arg0: i32, %arg1: i32, %arg2: memref<16x128xf32, #tpu.memory_space<vmem>>, %arg3: memref<16x128xf32, #tpu.memory_space<vmem>>, %arg4: memref<2x32xf32, #tpu.memory_space<vmem>>, %arg5: memref<2x32xf32, #tpu.memory_space<vmem>>, %arg6: memref<1x1xf32, #tpu.memory_space<vmem>>, %arg7: memref<16x128xf32, #tpu.memory_space<vmem>>) attributes {dimension_semantics = [#tpu.dimension_semantics<parallel>, #tpu.dimension_semantics<arbitrary>], iteration_bounds = array<i64: 1, 1>, scalar_prefetch = 0 : i64, scratch_operands = 1 : i64, tpu.core_type = #tpu.core_type<tc>, window_params = [{transform_indices = @transform_0, window_bounds = array<i64: 16, 128>}, {transform_indices = @transform_1, window_bounds = array<i64: 16, 128>}, {pipeline_mode = #tpu.pipeline_mode<synchronous>, transform_indices = @transform_2, window_bounds = array<i64: 2, 32>}, {pipeline_mode = #tpu.pipeline_mode<synchronous>, transform_indices = @transform_3, window_bounds = array<i64: 2, 32>}, {transform_indices = @transform_4, window_bounds = array<i64: 1, 1>}]} {
    %c0_i32 = arith.constant 0 : i32
    %0 = arith.cmpi eq, %arg1, %c0_i32 : i32
    %1 = arith.extui %0 : i1 to i32
    %c0_i32_0 = arith.constant 0 : i32
    %2 = arith.cmpi ne, %1, %c0_i32_0 : i32
    scf.if %2 {
      %cst = arith.constant 0.000000e+00 : f32
      %13 = vector.broadcast %cst : f32 to vector<16x128xf32>
      %c0_10 = arith.constant 0 : index
      %c0_11 = arith.constant 0 : index
      %14 = vector.load %arg7[%c0_10, %c0_11] : memref<16x128xf32, #tpu.memory_space<vmem>>, vector<16x128xf32>
      tpu.vector_store %arg7[%c0_10, %c0_11], %13 {strides = array<i32>} : memref<16x128xf32, #tpu.memory_space<vmem>>, vector<16x128xf32>,
    } else {
    }
    %c0 = arith.constant 0 : index
    %c0_1 = arith.constant 0 : index
    %3 = vector.load %arg3[%c0, %c0_1] : memref<16x128xf32, #tpu.memory_space<vmem>>, vector<16x128xf32>
    %c0_2 = arith.constant 0 : index
    %c0_3 = arith.constant 0 : index
    %4 = vector.load %arg2[%c0_2, %c0_3] : memref<16x128xf32, #tpu.memory_space<vmem>>, vector<16x128xf32>
    %5 = arith.subf %3, %4 : vector<16x128xf32>
    %c0_4 = arith.constant 0 : index
    %c0_5 = arith.constant 0 : index
    %6 = vector.load %arg7[%c0_4, %c0_5] : memref<16x128xf32, #tpu.memory_space<vmem>>, vector<16x128xf32>
    %7 = arith.mulf %5, %5 : vector<16x128xf32>
    %8 = arith.addf %6, %7 : vector<16x128xf32>
    %c0_6 = arith.constant 0 : index
    %c0_7 = arith.constant 0 : index
    %9 = vector.load %arg7[%c0_6, %c0_7] : memref<16x128xf32, #tpu.memory_space<vmem>>, vector<16x128xf32>
    tpu.vector_store %arg7[%c0_6, %c0_7], %8 {strides = array<i32>} : memref<16x128xf32, #tpu.memory_space<vmem>>, vector<16x128xf32>,
    %c0_i32_8 = arith.constant 0 : i32
    %10 = arith.cmpi eq, %arg1, %c0_i32_8 : i32
    %11 = arith.extui %10 : i1 to i32
    %c0_i32_9 = arith.constant 0 : i32
    %12 = arith.cmpi ne, %11, %c0_i32_9 : i32
    scf.if %12 {
      %c0_10 = arith.constant 0 : index
      %c0_11 = arith.constant 0 : index
      %13 = vector.load %arg7[%c0_10, %c0_11] : memref<16x128xf32, #tpu.memory_space<vmem>>, vector<16x128xf32>
      %14 = vector.shape_cast %13 : vector<16x128xf32> to vector<1x16x128xf32>
      %cst = arith.constant dense<0.000000e+00> : vector<1xf32>
      %15 = vector.multi_reduction <add>, %14, %cst [1, 2] : vector<1x16x128xf32> to vector<1xf32>
      %16 = vector.shape_cast %15 : vector<1xf32> to vector<1x1x1xf32>
      %17 = vector.extract %16[0, 0, 0] : f32 from vector<1x1x1xf32>
      %cst_12 = arith.constant 0.244140625 : f32
      %18 = arith.mulf %17, %cst_12 : f32
      %c0_13 = arith.constant 0 : index
      %c0_14 = arith.constant 0 : index
      %19 = vector.load %arg4[%c0_13, %c0_14] : memref<2x32xf32, #tpu.memory_space<vmem>>, vector<2x32xf32>
      %c0_15 = arith.constant 0 : index
      %c0_16 = arith.constant 0 : index
      %20 = vector.load %arg5[%c0_15, %c0_16] : memref<2x32xf32, #tpu.memory_space<vmem>>, vector<2x32xf32>
      %cst_17 = arith.constant 1.000000e+00 : f32
      %21 = vector.broadcast %cst_17 : f32 to vector<2x32xf32>
      %22 = arith.addf %21, %20 : vector<2x32xf32>
      %23 = arith.mulf %19, %19 : vector<2x32xf32>
      %24 = arith.subf %22, %23 : vector<2x32xf32>
      %25 = math.exp %20 : vector<2x32xf32>
      %26 = arith.subf %24, %25 : vector<2x32xf32>
      %27 = vector.shape_cast %26 : vector<2x32xf32> to vector<1x2x32xf32>
      %cst_18 = arith.constant dense<0.000000e+00> : vector<1xf32>
      %28 = vector.multi_reduction <add>, %27, %cst_18 [1, 2] : vector<1x2x32xf32> to vector<1xf32>
      %29 = vector.shape_cast %28 : vector<1xf32> to vector<1x1x1xf32>
      %30 = vector.extract %29[0, 0, 0] : f32 from vector<1x1x1xf32>
      %cst_19 = arith.constant -5.000000e-01 : f32
      %31 = arith.mulf %cst_19, %30 : f32
      %c0_i32_20 = arith.constant 0 : i32
      %32 = arith.cmpi eq, %arg0, %c0_i32_20 : i32
      %cst_21 = arith.constant 0.000000e+00 : f32
      %33 = arith.select %32, %31, %cst_21 : f32
      %34 = arith.addf %18, %33 : f32
      %35 = vector.broadcast %34 : f32 to vector<1x1xf32>
      %c0_22 = arith.constant 0 : index
      %c0_23 = arith.constant 0 : index
      %36 = vector.load %arg6[%c0_22, %c0_23] : memref<1x1xf32, #tpu.memory_space<vmem>>, vector<1x1xf32>
      tpu.vector_store %arg6[%c0_22, %c0_23], %35 {strides = array<i32>} : memref<1x1xf32, #tpu.memory_space<vmem>>, vector<1x1xf32>,
    } else {
    }
    return
  }
  func.func @transform_0(%arg0: i32, %arg1: i32) -> (i32, i32) {
    %c1_i32 = arith.constant 1 : i32
    %0 = arith.muli %arg0, %c1_i32 : i32
    %1 = arith.addi %0, %arg1 : i32
    %c0_i32 = arith.constant 0 : i32
    %c0_i32_0 = arith.constant 0 : i32
    return %1, %c0_i32 : i32, i32
  }
  func.func @transform_1(%arg0: i32, %arg1: i32) -> (i32, i32) {
    %c1_i32 = arith.constant 1 : i32
    %0 = arith.muli %arg0, %c1_i32 : i32
    %1 = arith.addi %0, %arg1 : i32
    %c0_i32 = arith.constant 0 : i32
    %c0_i32_0 = arith.constant 0 : i32
    return %1, %c0_i32 : i32, i32
  }
  func.func @transform_2(%arg0: i32, %arg1: i32) -> (i32, i32) {
    %c0_i32 = arith.constant 0 : i32
    %c0_i32_0 = arith.constant 0 : i32
    %c0_i32_1 = arith.constant 0 : i32
    return %c0_i32, %c0_i32_0 : i32, i32
  }
  func.func @transform_3(%arg0: i32, %arg1: i32) -> (i32, i32) {
    %c0_i32 = arith.constant 0 : i32
    %c0_i32_0 = arith.constant 0 : i32
    %c0_i32_1 = arith.constant 0 : i32
    return %c0_i32, %c0_i32_0 : i32, i32
  }
  func.func @transform_4(%arg0: i32, %arg1: i32) -> (i32, i32) {
    %c0_i32 = arith.constant 0 : i32
    %c0_i32_0 = arith.constant 0 : i32
    return %arg0, %c0_i32 : i32, i32
  }
}

</mosaic_0001>

<llo_original>
// kernel: vae_loss.1
$region0: #{vae_loss.1}
  #allocation0 [shape = 'u32[]', space=smem, size = 0x4, offset = 0x4, fixed_abs, tag = 'smem constant byte address 0x4 - core index']
  #allocation1 [shape = 'u32[144,128]{1,0:T(1,128)}', space=vmem, size = 0x12000, scoped, tag = 'internal scratch']
  #allocation2 [shape = 'f32[16,128]{1,0:T(8,128)}', space=vmem, size = 0x2000, scoped, tag = 'scratch operand']
  %s0 = inlined_call_operand.vmem [shape: f32[16,128], index: 0, kind: input, shape index: {}]
  %s1 = inlined_call_operand.vmem [shape: f32[16,128], index: 1, kind: input, shape index: {}]
  %s2 = inlined_call_operand.vmem [shape: f32[2,32], index: 2, kind: input, shape index: {}]
  %s3 = inlined_call_operand.vmem [shape: f32[2,32], index: 3, kind: input, shape index: {}]
  %s4 = inlined_call_operand.hbm [shape: f32[1,1], index: 4, kind: output, shape index: {}]
  %s5 = sld [smem:[#allocation0]]
  $region34: #{vae_loss.1} parent=0
    _
  %s7 = ssub.s32 1, %s5
  %s8 = scalar_select 0, %s7, %s5
  $region1: #{vae_loss.1} parent=0
    #allocation3 [shape = 'u8[512]{0}', space=vmem, size = 0x400, scoped, tag = 'output window, operand 0, single buffered']
    #allocation4 [shape = 's32[1]{0}', space=sflag, size = 0x4, scoped, tag = 'scoped memory for vae_loss.1']
    %9 = vsyncpa [#allocation4], 0
    // Predicated region
    $region2: #{vae_loss.1} parent=1 // pred_check
      _
    $region3: #{vae_loss.1} parent=1 // pred_check_branch
      %11 = sbr.rel (0) target = $region5
    $region4: #{vae_loss.1} parent=1 // pred_region
      %s12 = sadd.s32 0, 0
      %s13 = smul.u32 2, %s12
      %p14 = scmp.lt.s32.totalorder %s13, 1
      %s15 = scalar_select %p14, %s13, 1
      %s16 = smul.addr %s15, 8
      %s17 = scalar_lea.vmem %s0, %s16
      %s18 = sadd.s32 0, 0
      %s19 = smul.u32 2, %s18
    $region5: #{vae_loss.1} parent=1 // pred_fallthru
      _
    // Predicated region
    $region6: #{vae_loss.1} parent=1 // pred_check
      _
    $region7: #{vae_loss.1} parent=1 // pred_check_branch
      %21 = sbr.rel (0) target = $region9
    $region8: #{vae_loss.1} parent=1 // pred_region
      %s22 = sadd.s32 0, 0
      %s23 = smul.u32 2, %s22
      %p24 = scmp.lt.s32.totalorder %s23, 1
      %s25 = scalar_select %p24, %s23, 1
      %s26 = smul.addr %s25, 8
      %s27 = scalar_lea.vmem %s1, %s26
      %s28 = sadd.s32 0, 0
      %s29 = smul.u32 2, %s28
    $region9: #{vae_loss.1} parent=1 // pred_fallthru
      _
    // Predicated region
    $region10: #{vae_loss.1} parent=1 // pred_check
      _
    $region11: #{vae_loss.1} parent=1 // pred_check_branch
      %31 = sbr.rel (0) target = $region13
    $region12: #{vae_loss.1} parent=1 // pred_region
      _
    $region13: #{vae_loss.1} parent=1 // pred_fallthru
      _
    // Predicated region
    $region14: #{vae_loss.1} parent=1 // pred_check
      _
    $region15: #{vae_loss.1} parent=1 // pred_check_branch
      %33 = sbr.rel (0) target = $region17
    $region16: #{vae_loss.1} parent=1 // pred_region
      _
    $region17: #{vae_loss.1} parent=1 // pred_fallthru
      _
    %s34 = sadd.s32 0, 0
    %s35 = smul.u32 2, %s34
    %p36 = scmp.lt.s32.totalorder %s35, 1
    %s37 = scalar_select %p36, %s35, 1
    %s38 = smul.addr %s37, 8
    %s39 = scalar_lea.vmem %s0, %s38
    %s40 = sadd.s32 0, 0
    %s41 = smul.u32 2, %s40
    %p42 = scmp.lt.s32.totalorder %s41, 1
    %s43 = scalar_select %p42, %s41, 1
    %s44 = smul.addr %s43, 8
    %s45 = scalar_lea.vmem %s1, %s44
    %s46 = sadd.s32 0, 0
    %s47 = smul.u32 2, %s46
    %p48 = scmp.lt.s32.totalorder %s47, 1
    %s49 = scalar_select %p48, %s47, 1
    %s50 = smul.addr %s49, 8
    %s51 = scalar_lea.vmem %s0, %s50
    %s52 = sadd.s32 0, 0
    %s53 = smul.u32 2, %s52
    %s54 = sadd.s32 0, 0
    %s55 = smul.u32 2, %s54
    %p56 = scmp.lt.s32.totalorder %s55, 1
    %s57 = scalar_select %p56, %s55, 1
    %s58 = smul.addr %s57, 8
    %s59 = scalar_lea.vmem %s1, %s58
    %s60 = sadd.s32 0, 0
    %s61 = smul.u32 2, %s60
    %p62 = scmp.eq.s32.totalorder 0, 0
    // Predicated region
    $region18: #{vae_loss.1} parent=1 // pred_check
      %p63 = pneg %p62
    $region19: #{vae_loss.1} parent=1 // pred_check_branch
      %65 = sbr.rel (%p63) target = $region21
    $region20: #{vae_loss.1} parent=1 // pred_region
      %66 = vst [vmem:[#allocation2] sm:$0xff] 0.0
      %67 = vst [vmem:[#allocation2 + $0x8] sm:$0xff] 0.0
    $region21: #{vae_loss.1} parent=1 // pred_fallthru
      _
    %v68 = vld [vmem:[%s59] sm:$0xff]
    %v69 = vld [vmem:[%s59 + $0x8] sm:$0xff]
    %v70 = vld [vmem:[%s51] sm:$0xff]
    %v71 = vld [vmem:[%s51 + $0x8] sm:$0xff]
    %v72 = vsub.f32 %v68, %v70
    %v73 = vsub.f32 %v69, %v71
    %v74 = vld [vmem:[#allocation2] sm:$0xff]
    %v75 = vld [vmem:[#allocation2 + $0x8] sm:$0xff]
    %v76 = vmul.f32 %v72, %v72
    %v77 = vmul.f32 %v73, %v73
    %v78 = vadd.f32 %v74, %v76
    %v79 = vadd.f32 %v75, %v77
    %80 = vst [vmem:[#allocation2] sm:$0xff] %v78
    %81 = vst [vmem:[#allocation2 + $0x8] sm:$0xff] %v79
    // Predicated region
    $region22: #{vae_loss.1} parent=1 // pred_check
      %p82 = pneg %p62
    $region23: #{vae_loss.1} parent=1 // pred_check_branch
      %84 = sbr.rel (%p82) target = $region25
    $region24: #{vae_loss.1} parent=1 // pred_region
      %v85 = vld [vmem:[#allocation2] sm:$0xff]
      %v86 = vld [vmem:[#allocation2 + $0x8] sm:$0xff]
      %v87 = vadd.f32 %v85, %v86
      %88 = vadd.xlane.f32.xlu0 %v87
      %v89 = vpop.xlane.xlu0 %88
      %v90 = vrot.slane %v89, 4
      %v91 = vadd.f32 %v89, %v90
      %v92 = vrot.slane %v91, 2
      %v93 = vadd.f32 %v91, %v92
      %v94 = vrot.slane %v93, 1
      %v95 = vadd.f32 %v93, %v94
      %s96 = vtos %v95
      %s97 = smul.f32 %s96, 0.24414063
      %v98 = vld [vmem:[%s2] sm:$0x3]
      %v99 = vld [vmem:[%s3] sm:$0x3]
      %v100 = vadd.f32 %v99, 1.0
      %v101 = vmul.f32 %v98, %v98
      %v102 = vsub.f32 %v100, %v101
      %v103 = vmul.f32 %v99, 1.442695
      %v104 = vpow.pop %v103
      %v105 = vsub.f32 %v102, %v104
      %vm106 = vcmask 254976
      %v107 = vsel %vm106, %v105, 0.0
      %108 = vadd.xlane.f32.xlu0 %v107
      %v109 = vpop.xlane.xlu0 %108
      %v110 = vrot.slane %v109, 4
      %v111 = vadd.f32 %v109, %v110
      %v112 = vrot.slane %v111, 2
      %v113 = vadd.f32 %v111, %v112
      %v114 = vrot.slane %v113, 1
      %v115 = vadd.f32 %v113, %v114
      %s116 = vtos %v115
      %s117 = smul.f32 %s116, -0.5
      %p118 = scmp.eq.s32.totalorder 0, 0
      %s119 = scalar_select %p118, %s117, 0.0
      %s120 = sadd.f32 %s97, %s119
      %v121 = vstv %s120
      %vm122 = vcmask 0
      %123 = vst.msk [vmem:[#allocation3] sm:$0x1] %vm122, %v121
    $region25: #{vae_loss.1} parent=1 // pred_fallthru
      _
    // Predicated region
    $region26: #{vae_loss.1} parent=1 // pred_check
      _
    $region27: #{vae_loss.1} parent=1 // pred_check_branch
      %125 = sbr.rel (0) target = $region29
    $region28: #{vae_loss.1} parent=1 // pred_region
      %s127 = ssub.s32 16, 16
      %128 = vsyncadd [#allocation4], %s127
      %s130 = sshll.u32 [#allocation3], 4
      %s131 = int_to_ptr.vmem [resolvable:$true] %s130
      %133 = dma.vmem_to_hbm [thread:$0]  %s131, 16, %s4, [#allocation4]
    $region29: #{vae_loss.1} parent=1 // pred_fallthru
      _
    // Predicated region
    $region30: #{vae_loss.1} parent=1 // pred_check
      _
    $region31: #{vae_loss.1} parent=1 // pred_check_branch
      %135 = sbr.rel (0) target = $region33
    $region32: #{vae_loss.1} parent=1 // pred_region
      %136 = dma.done [#allocation4], 16
    $region33: #{vae_loss.1} parent=1 // pred_fallthru
      _
    %137 = vsyncpa [#allocation4], 1

</llo_original>
